<compile_context>
chip_gen: v6e
topology: v6e:2x2x1
jax: 0.10.0
libtpu: 0.0.40
codegen_flags: <defaults>
</compile_context>

<pallas_src>
import jax
import jax.numpy as jnp
from jax import lax
from jax.experimental import pallas as pl
from jax.experimental.pallas import tpu as pltpu


def _round_up(a, b):
    return (a + b - 1) // b * b


def _vmem_capacity_bytes():
    """Per-TensorCore VMEM capacity; conservative (v7x-sized) default on failure."""
    try:
        return int(pltpu.get_tpu_info().vmem_capacity_bytes)
    except Exception:
        return 64 * 1024 * 1024


# ---------------------------------------------------------------------------
# Kernels
# ---------------------------------------------------------------------------

def gap_conv1x1_fast_kernel(x_ref, wt_ref, b_ref, o_ref):
    """Single-block path: the whole (nb, C, HW) slab is resident in VMEM."""
    pooled = jnp.sum(x_ref[...].astype(jnp.float32), axis=-1)            # (nb, C)
    out = jnp.dot(pooled, wt_ref[...], preferred_element_type=jnp.float32)
    o_ref[...] = (out + b_ref[...]).astype(o_ref.dtype)


def _make_tiled_kernel(rem, hw_tile):
    """HW-tiled reduction path. `rem` = number of valid lanes in the last chunk."""
    needs_mask = rem != hw_tile

    def kernel(x_ref, wt_ref, b_ref, o_ref, acc_ref):
        # x_ref:  (nb, C, hw_tile) one HW chunk for nb batch rows
        # acc_ref:(nb, C) f32      running spatial sum across HW chunks
        k = pl.program_id(1)
        last = pl.num_programs(1) - 1

        @pl.when(k == 0)
        def _():
            acc_ref[...] = jnp.zeros_like(acc_ref)

        @pl.when(k != last)
        def _():
            acc_ref[...] += jnp.sum(x_ref[...].astype(jnp.float32), axis=-1)

        @pl.when(k == last)
        def _():
            x = x_ref[...].astype(jnp.float32)
            if needs_mask:
                # Ragged last chunk: the input is NOT padded, so lanes beyond
                # HW hold unspecified data -- zero them before accumulating.
                lane = lax.broadcasted_iota(jnp.int32, x.shape, dimension=2)
                x = jnp.where(lane < rem, x, 0.0)
            acc_ref[...] += jnp.sum(x, axis=-1)
            out = jnp.dot(acc_ref[...], wt_ref[...],
                          preferred_element_type=jnp.float32)
            o_ref[...] = (out + b_ref[...]).astype(o_ref.dtype)

    return kernel


# ---------------------------------------------------------------------------
# Wrapper
# ---------------------------------------------------------------------------

def mean_conv2d(x, weight, bias, *, nb_max=8, force_tiled=False, hw_tile_override=None):
    """x: [N, C, H, W]; weight: [Co, C, 1, 1]; bias: [Co] -> [N, Co, 1, 1]."""
    N, C, H, W = x.shape
    Co = weight.shape[0]
    HW = H * W
    itemsize = jnp.dtype(x.dtype).itemsize

    vmem_cap = _vmem_capacity_bytes()

    # Batch tile: whole batch if small, otherwise 8-row (sublane-aligned) tiles.
    nb = N if N <= nb_max else nb_max
    n_tiles = pl.cdiv(N, nb)

    # Lane-dense params: f32 W^T with the 1/HW mean scale folded in, bias row,
    # output channels padded to a full 128-lane register (sliced off at the end).
    Co_pad = _round_up(Co, 128)
    w_t = weight.reshape(Co, C).T.astype(jnp.float32) * (1.0 / HW)        # (C, Co) f32
    w_t = jnp.pad(w_t, ((0, 0), (0, Co_pad - Co)))                        # (C, Co_pad)
    b_row = jnp.pad(bias.astype(jnp.float32).reshape(1, Co),
                    ((0, 0), (0, Co_pad - Co)))                           # (1, Co_pad)

    x_flat = x.reshape(N, C, HW)   # pure reshape; no padding copies anywhere

    params_bytes = 2 * (C * Co_pad * 4 + Co_pad * 4)      # double-buffered weight+bias
    out_bytes = 2 * nb * Co_pad * itemsize
    cost = pl.CostEstimate(
        flops=int(N * C * HW + 2 * N * C * Co_pad + N * Co_pad),
        transcendentals=0,
        bytes_accessed=int(N * C * HW * itemsize + C * Co_pad * 4
                           + Co_pad * 4 + N * Co_pad * itemsize),
    )

    # ---- Fast single-block path: whole HW in one block, no reduction axis. ----
    fast_block_bytes = nb * C * HW * itemsize
    fast_budget = min(vmem_cap // 3, 32 * 1024 * 1024)
    if (2 * fast_block_bytes <= fast_budget) and not force_tiled:
        vmem_limit = min(max(2 * fast_block_bytes + params_bytes + out_bytes + (8 << 20),
                             32 << 20),
                         int(vmem_cap * 0.75))
        out = pl.pallas_call(
            gap_conv1x1_fast_kernel,
            out_shape=jax.ShapeDtypeStruct((N, Co_pad), x.dtype),
            grid_spec=pltpu.PrefetchScalarGridSpec(
                num_scalar_prefetch=0,
                grid=(n_tiles,),
                in_specs=[
                    pl.BlockSpec((nb, C, HW), lambda i: (i, 0, 0)),
                    pl.BlockSpec((C, Co_pad), lambda i: (0, 0)),
                    pl.BlockSpec((1, Co_pad), lambda i: (0, 0)),
                ],
                out_specs=pl.BlockSpec((nb, Co_pad), lambda i: (i, 0)),
            ),
            compiler_params=pltpu.CompilerParams(
                dimension_semantics=("parallel",),
                vmem_limit_bytes=int(vmem_limit),
            ),
            cost_estimate=cost,
        )(x_flat, w_t, b_row)
        return out[:N, :Co].reshape(N, Co, 1, 1)

    # ---- Tiled reduction path: stream HW in 128-aligned chunks, f32 accumulator. ----
    # Generation-aware chunk cap: keep the double-buffered x footprint well under
    # the TC's VMEM (v7x: 64 MiB -> <= 1024 lanes; v5e/v6e: 128 MiB -> <= 2048).
    hw_tile_cap = 2048 if vmem_cap >= (100 << 20) else 1024
    input_db_budget = min(vmem_cap // 2, 80 * 1024 * 1024)
    hw_tile = min(hw_tile_cap, _round_up(HW, 128))
    while hw_tile > 128 and 2 * nb * C * hw_tile * itemsize > input_db_budget:
        hw_tile -= 128
    if hw_tile_override is not None:
        hw_tile = hw_tile_override          # test hook; must be a multiple of 128
    hw_tile = max(hw_tile, 128)

    k_chunks = pl.cdiv(HW, hw_tile)
    rem = HW - (k_chunks - 1) * hw_tile     # valid lanes in the (possibly ragged) last chunk

    x_block_bytes = nb * C * hw_tile * itemsize
    acc_bytes = nb * C * 4
    vmem_limit = min(max(2 * x_block_bytes + params_bytes + out_bytes + acc_bytes + (8 << 20),
                         32 << 20),
                     int(vmem_cap * 0.75))

    # TODO(synk): for N == 1 with many HW chunks on v7x, split the chunk stream across
    # the two TensorCores (leading parallel axis of size 2 + partial-sum combine) so the
    # second core's DMA engine isn't idle.
    out = pl.pallas_call(
        _make_tiled_kernel(rem, hw_tile),
        out_shape=jax.ShapeDtypeStruct((N, Co_pad), x.dtype),
        grid_spec=pltpu.PrefetchScalarGridSpec(
            num_scalar_prefetch=0,
            grid=(n_tiles, k_chunks),
            in_specs=[
                pl.BlockSpec((nb, C, hw_tile), lambda i, k: (i, 0, k)),
                pl.BlockSpec((C, Co_pad), lambda i, k: (0, 0)),
                pl.BlockSpec((1, Co_pad), lambda i, k: (0, 0)),
            ],
            out_specs=pl.BlockSpec((nb, Co_pad), lambda i, k: (i, 0)),
            scratch_shapes=[pltpu.VMEM((nb, C), jnp.float32)],
        ),
        compiler_params=pltpu.CompilerParams(
            dimension_semantics=("parallel", "arbitrary"),
            vmem_limit_bytes=int(vmem_limit),
        ),
        cost_estimate=cost,
    )(x_flat, w_t, b_row)
    return out[:N, :Co].reshape(N, Co, 1, 1)


# ---------------------------------------------------------------------------
# Self-test
# ---------------------------------------------------------------------------

if __name__ == "__main__":
    key = jax.random.PRNGKey(0)
    kx1, kx2, kx3, kw, kb = jax.random.split(key, 5)

    C, Co = 480, 20   # fixed by the module: Conv2d(480, 20, kernel_size=(1,1))
    weight = jax.random.normal(kw, (Co, C, 1, 1), dtype=jnp.float32) * 0.05
    bias = jax.random.normal(kb, (Co,), dtype=jnp.float32) * 0.05

    def reference(x):
        pooled = jnp.mean(x, axis=(2, 3), keepdims=True)
        return jnp.einsum("ncij,ocij->noij", pooled, weight) + bias.reshape(1, Co, 1, 1)

    # 1) Small batched shape -> fast single-block path (nb == N, no padding).
    x1 = jax.random.normal(kx1, (2, C, 8, 8), dtype=jnp.float32)
    o1 = jax.block_until_ready(mean_conv2d(x1, weight, bias))
    assert o1.shape == (2, Co, 1, 1)
    assert jnp.allclose(o1, reference(x1), atol=1e-4, rtol=1e-4)

    # 2) The spec's own shape (1, 480, 28, 28) -> fast path, no padding at all.
    x2 = jax.random.normal(kx2, (1, C, 28, 28), dtype=jnp.float32)
    o2 = jax.block_until_ready(mean_conv2d(x2, weight, bias))
    assert o2.shape == (1, Co, 1, 1)
    assert jnp.allclose(o2, reference(x2), atol=1e-4, rtol=1e-4)

    # 3) Force the HW-tiled reduction path with a ragged (in-kernel masked) last
    #    chunk AND a batch that doesn't divide the batch tile (boundary blocks).
    x3 = jax.random.normal(kx3, (10, C, 28, 28), dtype=jnp.float32)
    o3 = jax.block_until_ready(
        mean_conv2d(x3, weight, bias, force_tiled=True, hw_tile_override=256))
    assert o3.shape == (10, Co, 1, 1)
    assert jnp.allclose(o3, reference(x3), atol=1e-4, rtol=1e-4)

    print("KERNEL_OK")
</pallas_src>

<mosaic_0001>
module attributes {stable_mosaic.version = 11 : i64} {
  func.func @gap_conv1x1_fast_kernel(%arg0: i32, %arg1: memref<2x480x64xf32, #tpu.memory_space<vmem>>, %arg2: memref<480x128xf32, #tpu.memory_space<vmem>>, %arg3: memref<1x128xf32, #tpu.memory_space<vmem>>, %arg4: memref<2x128xf32, #tpu.memory_space<vmem>>) attributes {dimension_semantics = [#tpu.dimension_semantics<parallel>], iteration_bounds = array<i64: 1>, scalar_prefetch = 0 : i64, scratch_operands = 0 : i64, tpu.core_type = #tpu.core_type<tc>, window_params = [{transform_indices = @transform_0, window_bounds = array<i64: 2, 480, 64>}, {pipeline_mode = #tpu.pipeline_mode<synchronous>, transform_indices = @transform_1, window_bounds = array<i64: 480, 128>}, {pipeline_mode = #tpu.pipeline_mode<synchronous>, transform_indices = @transform_2, window_bounds = array<i64: 1, 128>}, {transform_indices = @transform_3, window_bounds = array<i64: 2, 128>}]} {
    %c0 = arith.constant 0 : index
    %c0_0 = arith.constant 0 : index
    %c0_1 = arith.constant 0 : index
    %0 = vector.load %arg1[%c0, %c0_0, %c0_1] : memref<2x480x64xf32, #tpu.memory_space<vmem>>, vector<2x480x64xf32>
    %cst = arith.constant dense<0.000000e+00> : vector<2x480xf32>
    %1 = vector.multi_reduction <add>, %0, %cst [2] : vector<2x480x64xf32> to vector<2x480xf32>
    %c0_2 = arith.constant 0 : index
    %c0_3 = arith.constant 0 : index
    %2 = vector.load %arg2[%c0_2, %c0_3] : memref<480x128xf32, #tpu.memory_space<vmem>>, vector<480x128xf32>
    %cst_4 = arith.constant dense<0.000000e+00> : vector<2x128xf32>
    %3 = tpu.matmul %1, %2, %cst_4 {dimension_numbers = #tpu.dot_dimension_numbers<[1], [0], [0], [1], [0, 0, 1, 1], [], []>} : vector<2x480xf32>, vector<480x128xf32>, vector<2x128xf32> -> vector<2x128xf32>
    %c0_5 = arith.constant 0 : index
    %c0_6 = arith.constant 0 : index
    %4 = vector.load %arg3[%c0_5, %c0_6] : memref<1x128xf32, #tpu.memory_space<vmem>>, vector<1x128xf32>
    %5 = vector.broadcast %4 : vector<1x128xf32> to vector<2x128xf32>
    %6 = arith.addf %3, %5 : vector<2x128xf32>
    %c0_7 = arith.constant 0 : index
    %c0_8 = arith.constant 0 : index
    %7 = vector.load %arg4[%c0_7, %c0_8] : memref<2x128xf32, #tpu.memory_space<vmem>>, vector<2x128xf32>
    tpu.vector_store %arg4[%c0_7, %c0_8], %6 {strides = array<i32>} : memref<2x128xf32, #tpu.memory_space<vmem>>, vector<2x128xf32>,
    return
  }
  func.func @transform_0(%arg0: i32) -> (i32, i32, i32) {
    %c0_i32 = arith.constant 0 : i32
    %c0_i32_0 = arith.constant 0 : i32
    %c0_i32_1 = arith.constant 0 : i32
    return %arg0, %c0_i32, %c0_i32_0 : i32, i32, i32
  }
  func.func @transform_1(%arg0: i32) -> (i32, i32) {
    %c0_i32 = arith.constant 0 : i32
    %c0_i32_0 = arith.constant 0 : i32
    %c0_i32_1 = arith.constant 0 : i32
    return %c0_i32, %c0_i32_0 : i32, i32
  }
  func.func @transform_2(%arg0: i32) -> (i32, i32) {
    %c0_i32 = arith.constant 0 : i32
    %c0_i32_0 = arith.constant 0 : i32
    %c0_i32_1 = arith.constant 0 : i32
    return %c0_i32, %c0_i32_0 : i32, i32
  }
  func.func @transform_3(%arg0: i32) -> (i32, i32) {
    %c0_i32 = arith.constant 0 : i32
    %c0_i32_0 = arith.constant 0 : i32
    return %arg0, %c0_i32 : i32, i32
  }
}

</mosaic_0001>

<llo_original>
// kernel: tpu_custom_call.1
$region0: #{tpu_custom_call.1}
  #allocation0 [shape = 'u32[]', space=smem, size = 0x4, offset = 0x4, fixed_abs, tag = 'smem constant byte address 0x4 - core index']
  #allocation1 [shape = 'u32[144,128]{1,0:T(1,128)}', space=vmem, size = 0x12000, scoped, tag = 'internal scratch']
  %s0 = inlined_call_operand.vmem [shape: f32[2,480,64], index: 0, kind: input, shape index: {}]
  %s1 = inlined_call_operand.vmem [shape: f32[480,128], index: 1, kind: input, shape index: {}]
  %s2 = inlined_call_operand.vmem [shape: f32[1,128], index: 2, kind: input, shape index: {}]
  %s3 = inlined_call_operand.hbm [shape: f32[2,128], index: 3, kind: output, shape index: {}]
  %s4 = sld [smem:[#allocation0]]
  $region22: #{tpu_custom_call.1} parent=0
    _
  %s6 = ssub.s32 1, %s4
  %s7 = scalar_select 0, %s6, %s4
  $region1: #{tpu_custom_call.1} parent=0
    #allocation2 [shape = 'u8[1024]{0}', space=vmem, size = 0x400, scoped, tag = 'output window, operand 0, single buffered']
    #allocation3 [shape = 's32[1]{0}', space=sflag, size = 0x4, scoped, tag = 'scoped memory for tpu_custom_call.1']
    %8 = vsyncpa [#allocation3], 0
    // Predicated region
    $region2: #{tpu_custom_call.1} parent=1 // pred_check
      _
    $region3: #{tpu_custom_call.1} parent=1 // pred_check_branch
      %10 = sbr.rel (0) target = $region5
    $region4: #{tpu_custom_call.1} parent=1 // pred_region
      _
    $region5: #{tpu_custom_call.1} parent=1 // pred_fallthru
      _
    // Predicated region
    $region6: #{tpu_custom_call.1} parent=1 // pred_check
      _
    $region7: #{tpu_custom_call.1} parent=1 // pred_check_branch
      %12 = sbr.rel (0) target = $region9
    $region8: #{tpu_custom_call.1} parent=1 // pred_region
      _
    $region9: #{tpu_custom_call.1} parent=1 // pred_fallthru
      _
    // Predicated region
    $region10: #{tpu_custom_call.1} parent=1 // pred_check
      _
    $region11: #{tpu_custom_call.1} parent=1 // pred_check_branch
      %14 = sbr.rel (0) target = $region13
    $region12: #{tpu_custom_call.1} parent=1 // pred_region
      _
    $region13: #{tpu_custom_call.1} parent=1 // pred_fallthru
      _
    %v15 = vld [vmem:[%s0] sm:$0xff]
    %v16 = vld [vmem:[%s0 + $0x8] sm:$0xff]
    %v17 = vld [vmem:[%s0 + $0x10] sm:$0xff]
    %v18 = vld [vmem:[%s0 + $0x18] sm:$0xff]
    %v19 = vld [vmem:[%s0 + $0x20] sm:$0xff]
    %v20 = vld [vmem:[%s0 + $0x28] sm:$0xff]
    %v21 = vld [vmem:[%s0 + $0x30] sm:$0xff]
    %v22 = vld [vmem:[%s0 + $0x38] sm:$0xff]
    %v23 = vld [vmem:[%s0 + $0x40] sm:$0xff]
    %v24 = vld [vmem:[%s0 + $0x48] sm:$0xff]
    %v25 = vld [vmem:[%s0 + $0x50] sm:$0xff]
    %v26 = vld [vmem:[%s0 + $0x58] sm:$0xff]
    %v27 = vld [vmem:[%s0 + $0x60] sm:$0xff]
    %v28 = vld [vmem:[%s0 + $0x68] sm:$0xff]
    %v29 = vld [vmem:[%s0 + $0x70] sm:$0xff]
    %v30 = vld [vmem:[%s0 + $0x78] sm:$0xff]
    %v31 = vld [vmem:[%s0 + $0x80] sm:$0xff]
    %v32 = vld [vmem:[%s0 + $0x88] sm:$0xff]
    %v33 = vld [vmem:[%s0 + $0x90] sm:$0xff]
    %v34 = vld [vmem:[%s0 + $0x98] sm:$0xff]
    %v35 = vld [vmem:[%s0 + $0xa0] sm:$0xff]
    %v36 = vld [vmem:[%s0 + $0xa8] sm:$0xff]
    %v37 = vld [vmem:[%s0 + $0xb0] sm:$0xff]
    %v38 = vld [vmem:[%s0 + $0xb8] sm:$0xff]
    %v39 = vld [vmem:[%s0 + $0xc0] sm:$0xff]
    %v40 = vld [vmem:[%s0 + $0xc8] sm:$0xff]
    %v41 = vld [vmem:[%s0 + $0xd0] sm:$0xff]
    %v42 = vld [vmem:[%s0 + $0xd8] sm:$0xff]
    %v43 = vld [vmem:[%s0 + $0xe0] sm:$0xff]
    %v44 = vld [vmem:[%s0 + $0xe8] sm:$0xff]
    %v45 = vld [vmem:[%s0 + $0xf0] sm:$0xff]
    %v46 = vld [vmem:[%s0 + $0xf8] sm:$0xff]
    %v47 = vld [vmem:[%s0 + $0x100] sm:$0xff]
    %v48 = vld [vmem:[%s0 + $0x108] sm:$0xff]
    %v49 = vld [vmem:[%s0 + $0x110] sm:$0xff]
    %v50 = vld [vmem:[%s0 + $0x118] sm:$0xff]
    %v51 = vld [vmem:[%s0 + $0x120] sm:$0xff]
    %v52 = vld [vmem:[%s0 + $0x128] sm:$0xff]
    %v53 = vld [vmem:[%s0 + $0x130] sm:$0xff]
    %v54 = vld [vmem:[%s0 + $0x138] sm:$0xff]
    %v55 = vld [vmem:[%s0 + $0x140] sm:$0xff]
    %v56 = vld [vmem:[%s0 + $0x148] sm:$0xff]
    %v57 = vld [vmem:[%s0 + $0x150] sm:$0xff]
    %v58 = vld [vmem:[%s0 + $0x158] sm:$0xff]
    %v59 = vld [vmem:[%s0 + $0x160] sm:$0xff]
    %v60 = vld [vmem:[%s0 + $0x168] sm:$0xff]
    %v61 = vld [vmem:[%s0 + $0x170] sm:$0xff]
    %v62 = vld [vmem:[%s0 + $0x178] sm:$0xff]
    %v63 = vld [vmem:[%s0 + $0x180] sm:$0xff]
    %v64 = vld [vmem:[%s0 + $0x188] sm:$0xff]
    %v65 = vld [vmem:[%s0 + $0x190] sm:$0xff]
    %v66 = vld [vmem:[%s0 + $0x198] sm:$0xff]
    %v67 = vld [vmem:[%s0 + $0x1a0] sm:$0xff]
    %v68 = vld [vmem:[%s0 + $0x1a8] sm:$0xff]
    %v69 = vld [vmem:[%s0 + $0x1b0] sm:$0xff]
    %v70 = vld [vmem:[%s0 + $0x1b8] sm:$0xff]
    %v71 = vld [vmem:[%s0 + $0x1c0] sm:$0xff]
    %v72 = vld [vmem:[%s0 + $0x1c8] sm:$0xff]
    %v73 = vld [vmem:[%s0 + $0x1d0] sm:$0xff]
    %v74 = vld [vmem:[%s0 + $0x1d8] sm:$0xff]
    %v75 = vld [vmem:[%s0 + $0x1e0] sm:$0xff]
    %v76 = vld [vmem:[%s0 + $0x1e8] sm:$0xff]
    %v77 = vld [vmem:[%s0 + $0x1f0] sm:$0xff]
    %v78 = vld [vmem:[%s0 + $0x1f8] sm:$0xff]
    %v79 = vld [vmem:[%s0 + $0x200] sm:$0xff]
    %v80 = vld [vmem:[%s0 + $0x208] sm:$0xff]
    %v81 = vld [vmem:[%s0 + $0x210] sm:$0xff]
    %v82 = vld [vmem:[%s0 + $0x218] sm:$0xff]
    %v83 = vld [vmem:[%s0 + $0x220] sm:$0xff]
    %v84 = vld [vmem:[%s0 + $0x228] sm:$0xff]
    %v85 = vld [vmem:[%s0 + $0x230] sm:$0xff]
    %v86 = vld [vmem:[%s0 + $0x238] sm:$0xff]
    %v87 = vld [vmem:[%s0 + $0x240] sm:$0xff]
    %v88 = vld [vmem:[%s0 + $0x248] sm:$0xff]
    %v89 = vld [vmem:[%s0 + $0x250] sm:$0xff]
    %v90 = vld [vmem:[%s0 + $0x258] sm:$0xff]
    %v91 = vld [vmem:[%s0 + $0x260] sm:$0xff]
    %v92 = vld [vmem:[%s0 + $0x268] sm:$0xff]
    %v93 = vld [vmem:[%s0 + $0x270] sm:$0xff]
    %v94 = vld [vmem:[%s0 + $0x278] sm:$0xff]
    %v95 = vld [vmem:[%s0 + $0x280] sm:$0xff]
    %v96 = vld [vmem:[%s0 + $0x288] sm:$0xff]
    %v97 = vld [vmem:[%s0 + $0x290] sm:$0xff]
    %v98 = vld [vmem:[%s0 + $0x298] sm:$0xff]
    %v99 = vld [vmem:[%s0 + $0x2a0] sm:$0xff]
    %v100 = vld [vmem:[%s0 + $0x2a8] sm:$0xff]
    %v101 = vld [vmem:[%s0 + $0x2b0] sm:$0xff]
    %v102 = vld [vmem:[%s0 + $0x2b8] sm:$0xff]
    %v103 = vld [vmem:[%s0 + $0x2c0] sm:$0xff]
    %v104 = vld [vmem:[%s0 + $0x2c8] sm:$0xff]
    %v105 = vld [vmem:[%s0 + $0x2d0] sm:$0xff]
    %v106 = vld [vmem:[%s0 + $0x2d8] sm:$0xff]
    %v107 = vld [vmem:[%s0 + $0x2e0] sm:$0xff]
    %v108 = vld [vmem:[%s0 + $0x2e8] sm:$0xff]
    %v109 = vld [vmem:[%s0 + $0x2f0] sm:$0xff]
    %v110 = vld [vmem:[%s0 + $0x2f8] sm:$0xff]
    %v111 = vld [vmem:[%s0 + $0x300] sm:$0xff]
    %v112 = vld [vmem:[%s0 + $0x308] sm:$0xff]
    %v113 = vld [vmem:[%s0 + $0x310] sm:$0xff]
    %v114 = vld [vmem:[%s0 + $0x318] sm:$0xff]
    %v115 = vld [vmem:[%s0 + $0x320] sm:$0xff]
    %v116 = vld [vmem:[%s0 + $0x328] sm:$0xff]
    %v117 = vld [vmem:[%s0 + $0x330] sm:$0xff]
    %v118 = vld [vmem:[%s0 + $0x338] sm:$0xff]
    %v119 = vld [vmem:[%s0 + $0x340] sm:$0xff]
    %v120 = vld [vmem:[%s0 + $0x348] sm:$0xff]
    %v121 = vld [vmem:[%s0 + $0x350] sm:$0xff]
    %v122 = vld [vmem:[%s0 + $0x358] sm:$0xff]
    %v123 = vld [vmem:[%s0 + $0x360] sm:$0xff]
    %v124 = vld [vmem:[%s0 + $0x368] sm:$0xff]
    %v125 = vld [vmem:[%s0 + $0x370] sm:$0xff]
    %v126 = vld [vmem:[%s0 + $0x378] sm:$0xff]
    %v127 = vld [vmem:[%s0 + $0x380] sm:$0xff]
    %v128 = vld [vmem:[%s0 + $0x388] sm:$0xff]
    %v129 = vld [vmem:[%s0 + $0x390] sm:$0xff]
    %v130 = vld [vmem:[%s0 + $0x398] sm:$0xff]
    %v131 = vld [vmem:[%s0 + $0x3a0] sm:$0xff]
    %v132 = vld [vmem:[%s0 + $0x3a8] sm:$0xff]
    %v133 = vld [vmem:[%s0 + $0x3b0] sm:$0xff]
    %v134 = vld [vmem:[%s0 + $0x3b8] sm:$0xff]
    %vm135 = vcmask 523264
    %v136 = vsel %vm135, %v15, 0.0
    %137 = vadd.xlane.f32.xlu0 %v136
    %v138 = vpop.xlane.xlu0 %137
    %v139 = vsel %vm135, %v16, 0.0
    %140 = vadd.xlane.f32.xlu0 %v139
    %v141 = vpop.xlane.xlu0 %140
    %v142 = vsel %vm135, %v17, 0.0
    %143 = vadd.xlane.f32.xlu0 %v142
    %v144 = vpop.xlane.xlu0 %143
    %v145 = vsel %vm135, %v18, 0.0
    %146 = vadd.xlane.f32.xlu0 %v145
    %v147 = vpop.xlane.xlu0 %146
    %v148 = vsel %vm135, %v19, 0.0
    %149 = vadd.xlane.f32.xlu0 %v148
    %v150 = vpop.xlane.xlu0 %149
    %v151 = vsel %vm135, %v20, 0.0
    %152 = vadd.xlane.f32.xlu0 %v151
    %v153 = vpop.xlane.xlu0 %152
    %v154 = vsel %vm135, %v21, 0.0
    %155 = vadd.xlane.f32.xlu0 %v154
    %v156 = vpop.xlane.xlu0 %155
    %v157 = vsel %vm135, %v22, 0.0
    %158 = vadd.xlane.f32.xlu0 %v157
    %v159 = vpop.xlane.xlu0 %158
    %v160 = vsel %vm135, %v23, 0.0
    %161 = vadd.xlane.f32.xlu0 %v160
    %v162 = vpop.xlane.xlu0 %161
    %v163 = vsel %vm135, %v24, 0.0
    %164 = vadd.xlane.f32.xlu0 %v163
    %v165 = vpop.xlane.xlu0 %164
    %v166 = vsel %vm135, %v25, 0.0
    %167 = vadd.xlane.f32.xlu0 %v166
    %v168 = vpop.xlane.xlu0 %167
    %v169 = vsel %vm135, %v26, 0.0
    %170 = vadd.xlane.f32.xlu0 %v169
    %v171 = vpop.xlane.xlu0 %170
    %v172 = vsel %vm135, %v27, 0.0
    %173 = vadd.xlane.f32.xlu0 %v172
    %v174 = vpop.xlane.xlu0 %173
    %v175 = vsel %vm135, %v28, 0.0
    %176 = vadd.xlane.f32.xlu0 %v175
    %v177 = vpop.xlane.xlu0 %176
    %v178 = vsel %vm135, %v29, 0.0
    %179 = vadd.xlane.f32.xlu0 %v178
    %v180 = vpop.xlane.xlu0 %179
    %v181 = vsel %vm135, %v30, 0.0
    %182 = vadd.xlane.f32.xlu0 %v181
    %v183 = vpop.xlane.xlu0 %182
    %v184 = vsel %vm135, %v31, 0.0
    %185 = vadd.xlane.f32.xlu0 %v184
    %v186 = vpop.xlane.xlu0 %185
    %v187 = vsel %vm135, %v32, 0.0
    %188 = vadd.xlane.f32.xlu0 %v187
    %v189 = vpop.xlane.xlu0 %188
    %v190 = vsel %vm135, %v33, 0.0
    %191 = vadd.xlane.f32.xlu0 %v190
    %v192 = vpop.xlane.xlu0 %191
    %v193 = vsel %vm135, %v34, 0.0
    %194 = vadd.xlane.f32.xlu0 %v193
    %v195 = vpop.xlane.xlu0 %194
    %v196 = vsel %vm135, %v35, 0.0
    %197 = vadd.xlane.f32.xlu0 %v196
    %v198 = vpop.xlane.xlu0 %197
    %v199 = vsel %vm135, %v36, 0.0
    %200 = vadd.xlane.f32.xlu0 %v199
    %v201 = vpop.xlane.xlu0 %200
    %v202 = vsel %vm135, %v37, 0.0
    %203 = vadd.xlane.f32.xlu0 %v202
    %v204 = vpop.xlane.xlu0 %203
    %v205 = vsel %vm135, %v38, 0.0
    %206 = vadd.xlane.f32.xlu0 %v205
    %v207 = vpop.xlane.xlu0 %206
    %v208 = vsel %vm135, %v39, 0.0
    %209 = vadd.xlane.f32.xlu0 %v208
    %v210 = vpop.xlane.xlu0 %209
    %v211 = vsel %vm135, %v40, 0.0
    %212 = vadd.xlane.f32.xlu0 %v211
    %v213 = vpop.xlane.xlu0 %212
    %v214 = vsel %vm135, %v41, 0.0
    %215 = vadd.xlane.f32.xlu0 %v214
    %v216 = vpop.xlane.xlu0 %215
    %v217 = vsel %vm135, %v42, 0.0
    %218 = vadd.xlane.f32.xlu0 %v217
    %v219 = vpop.xlane.xlu0 %218
    %v220 = vsel %vm135, %v43, 0.0
    %221 = vadd.xlane.f32.xlu0 %v220
    %v222 = vpop.xlane.xlu0 %221
    %v223 = vsel %vm135, %v44, 0.0
    %224 = vadd.xlane.f32.xlu0 %v223
    %v225 = vpop.xlane.xlu0 %224
    %v226 = vsel %vm135, %v45, 0.0
    %227 = vadd.xlane.f32.xlu0 %v226
    %v228 = vpop.xlane.xlu0 %227
    %v229 = vsel %vm135, %v46, 0.0
    %230 = vadd.xlane.f32.xlu0 %v229
    %v231 = vpop.xlane.xlu0 %230
    %v232 = vsel %vm135, %v47, 0.0
    %233 = vadd.xlane.f32.xlu0 %v232
    %v234 = vpop.xlane.xlu0 %233
    %v235 = vsel %vm135, %v48, 0.0
    %236 = vadd.xlane.f32.xlu0 %v235
    %v237 = vpop.xlane.xlu0 %236
    %v238 = vsel %vm135, %v49, 0.0
    %239 = vadd.xlane.f32.xlu0 %v238
    %v240 = vpop.xlane.xlu0 %239
    %v241 = vsel %vm135, %v50, 0.0
    %242 = vadd.xlane.f32.xlu0 %v241
    %v243 = vpop.xlane.xlu0 %242
    %v244 = vsel %vm135, %v51, 0.0
    %245 = vadd.xlane.f32.xlu0 %v244
    %v246 = vpop.xlane.xlu0 %245
    %v247 = vsel %vm135, %v52, 0.0
    %248 = vadd.xlane.f32.xlu0 %v247
    %v249 = vpop.xlane.xlu0 %248
    %v250 = vsel %vm135, %v53, 0.0
    %251 = vadd.xlane.f32.xlu0 %v250
    %v252 = vpop.xlane.xlu0 %251
    %v253 = vsel %vm135, %v54, 0.0
    %254 = vadd.xlane.f32.xlu0 %v253
    %v255 = vpop.xlane.xlu0 %254
    %v256 = vsel %vm135, %v55, 0.0
    %257 = vadd.xlane.f32.xlu0 %v256
    %v258 = vpop.xlane.xlu0 %257
    %v259 = vsel %vm135, %v56, 0.0
    %260 = vadd.xlane.f32.xlu0 %v259
    %v261 = vpop.xlane.xlu0 %260
    %v262 = vsel %vm135, %v57, 0.0
    %263 = vadd.xlane.f32.xlu0 %v262
    %v264 = vpop.xlane.xlu0 %263
    %v265 = vsel %vm135, %v58, 0.0
    %266 = vadd.xlane.f32.xlu0 %v265
    %v267 = vpop.xlane.xlu0 %266
    %v268 = vsel %vm135, %v59, 0.0
    %269 = vadd.xlane.f32.xlu0 %v268
    %v270 = vpop.xlane.xlu0 %269
    %v271 = vsel %vm135, %v60, 0.0
    %272 = vadd.xlane.f32.xlu0 %v271
    %v273 = vpop.xlane.xlu0 %272
    %v274 = vsel %vm135, %v61, 0.0
    %275 = vadd.xlane.f32.xlu0 %v274
    %v276 = vpop.xlane.xlu0 %275
    %v277 = vsel %vm135, %v62, 0.0
    %278 = vadd.xlane.f32.xlu0 %v277
    %v279 = vpop.xlane.xlu0 %278
    %v280 = vsel %vm135, %v63, 0.0
    %281 = vadd.xlane.f32.xlu0 %v280
    %v282 = vpop.xlane.xlu0 %281
    %v283 = vsel %vm135, %v64, 0.0
    %284 = vadd.xlane.f32.xlu0 %v283
    %v285 = vpop.xlane.xlu0 %284
    %v286 = vsel %vm135, %v65, 0.0
    %287 = vadd.xlane.f32.xlu0 %v286
    %v288 = vpop.xlane.xlu0 %287
    %v289 = vsel %vm135, %v66, 0.0
    %290 = vadd.xlane.f32.xlu0 %v289
    %v291 = vpop.xlane.xlu0 %290
    %v292 = vsel %vm135, %v67, 0.0
    %293 = vadd.xlane.f32.xlu0 %v292
    %v294 = vpop.xlane.xlu0 %293
    %v295 = vsel %vm135, %v68, 0.0
    %296 = vadd.xlane.f32.xlu0 %v295
    %v297 = vpop.xlane.xlu0 %296
    %v298 = vsel %vm135, %v69, 0.0
    %299 = vadd.xlane.f32.xlu0 %v298
    %v300 = vpop.xlane.xlu0 %299
    %v301 = vsel %vm135, %v70, 0.0
    %302 = vadd.xlane.f32.xlu0 %v301
    %v303 = vpop.xlane.xlu0 %302
    %v304 = vsel %vm135, %v71, 0.0
    %305 = vadd.xlane.f32.xlu0 %v304
    %v306 = vpop.xlane.xlu0 %305
    %v307 = vsel %vm135, %v72, 0.0
    %308 = vadd.xlane.f32.xlu0 %v307
    %v309 = vpop.xlane.xlu0 %308
    %v310 = vsel %vm135, %v73, 0.0
    %311 = vadd.xlane.f32.xlu0 %v310
    %v312 = vpop.xlane.xlu0 %311
    %v313 = vsel %vm135, %v74, 0.0
    %314 = vadd.xlane.f32.xlu0 %v313
    %v315 = vpop.xlane.xlu0 %314
    %v316 = vsel %vm135, %v75, 0.0
    %317 = vadd.xlane.f32.xlu0 %v316
    %v318 = vpop.xlane.xlu0 %317
    %v319 = vsel %vm135, %v76, 0.0
    %320 = vadd.xlane.f32.xlu0 %v319
    %v321 = vpop.xlane.xlu0 %320
    %v322 = vsel %vm135, %v77, 0.0
    %323 = vadd.xlane.f32.xlu0 %v322
    %v324 = vpop.xlane.xlu0 %323
    %v325 = vsel %vm135, %v78, 0.0
    %326 = vadd.xlane.f32.xlu0 %v325
    %v327 = vpop.xlane.xlu0 %326
    %v328 = vsel %vm135, %v79, 0.0
    %329 = vadd.xlane.f32.xlu0 %v328
    %v330 = vpop.xlane.xlu0 %329
    %v331 = vsel %vm135, %v80, 0.0
    %332 = vadd.xlane.f32.xlu0 %v331
    %v333 = vpop.xlane.xlu0 %332
    %v334 = vsel %vm135, %v81, 0.0
    %335 = vadd.xlane.f32.xlu0 %v334
    %v336 = vpop.xlane.xlu0 %335
    %v337 = vsel %vm135, %v82, 0.0
    %338 = vadd.xlane.f32.xlu0 %v337
    %v339 = vpop.xlane.xlu0 %338
    %v340 = vsel %vm135, %v83, 0.0
    %341 = vadd.xlane.f32.xlu0 %v340
    %v342 = vpop.xlane.xlu0 %341
    %v343 = vsel %vm135, %v84, 0.0
    %344 = vadd.xlane.f32.xlu0 %v343
    %v345 = vpop.xlane.xlu0 %344
    %v346 = vsel %vm135, %v85, 0.0
    %347 = vadd.xlane.f32.xlu0 %v346
    %v348 = vpop.xlane.xlu0 %347
    %v349 = vsel %vm135, %v86, 0.0
    %350 = vadd.xlane.f32.xlu0 %v349
    %v351 = vpop.xlane.xlu0 %350
    %v352 = vsel %vm135, %v87, 0.0
    %353 = vadd.xlane.f32.xlu0 %v352
    %v354 = vpop.xlane.xlu0 %353
    %v355 = vsel %vm135, %v88, 0.0
    %356 = vadd.xlane.f32.xlu0 %v355
    %v357 = vpop.xlane.xlu0 %356
    %v358 = vsel %vm135, %v89, 0.0
    %359 = vadd.xlane.f32.xlu0 %v358
    %v360 = vpop.xlane.xlu0 %359
    %v361 = vsel %vm135, %v90, 0.0
    %362 = vadd.xlane.f32.xlu0 %v361
    %v363 = vpop.xlane.xlu0 %362
    %v364 = vsel %vm135, %v91, 0.0
    %365 = vadd.xlane.f32.xlu0 %v364
    %v366 = vpop.xlane.xlu0 %365
    %v367 = vsel %vm135, %v92, 0.0
    %368 = vadd.xlane.f32.xlu0 %v367
    %v369 = vpop.xlane.xlu0 %368
    %v370 = vsel %vm135, %v93, 0.0
    %371 = vadd.xlane.f32.xlu0 %v370
    %v372 = vpop.xlane.xlu0 %371
    %v373 = vsel %vm135, %v94, 0.0
    %374 = vadd.xlane.f32.xlu0 %v373
    %v375 = vpop.xlane.xlu0 %374
    %v376 = vsel %vm135, %v95, 0.0
    %377 = vadd.xlane.f32.xlu0 %v376
    %v378 = vpop.xlane.xlu0 %377
    %v379 = vsel %vm135, %v96, 0.0
    %380 = vadd.xlane.f32.xlu0 %v379
    %v381 = vpop.xlane.xlu0 %380
    %v382 = vsel %vm135, %v97, 0.0
    %383 = vadd.xlane.f32.xlu0 %v382
    %v384 = vpop.xlane.xlu0 %383
    %v385 = vsel %vm135, %v98, 0.0
    %386 = vadd.xlane.f32.xlu0 %v385
    %v387 = vpop.xlane.xlu0 %386
    %v388 = vsel %vm135, %v99, 0.0
    %389 = vadd.xlane.f32.xlu0 %v388
    %v390 = vpop.xlane.xlu0 %389
    %v391 = vsel %vm135, %v100, 0.0
    %392 = vadd.xlane.f32.xlu0 %v391
    %v393 = vpop.xlane.xlu0 %392
    %v394 = vsel %vm135, %v101, 0.0
    %395 = vadd.xlane.f32.xlu0 %v394
    %v396 = vpop.xlane.xlu0 %395
    %v397 = vsel %vm135, %v102, 0.0
    %398 = vadd.xlane.f32.xlu0 %v397
    %v399 = vpop.xlane.xlu0 %398
    %v400 = vsel %vm135, %v103, 0.0
    %401 = vadd.xlane.f32.xlu0 %v400
    %v402 = vpop.xlane.xlu0 %401
    %v403 = vsel %vm135, %v104, 0.0
    %404 = vadd.xlane.f32.xlu0 %v403
    %v405 = vpop.xlane.xlu0 %404
    %v406 = vsel %vm135, %v105, 0.0
    %407 = vadd.xlane.f32.xlu0 %v406
    %v408 = vpop.xlane.xlu0 %407
    %v409 = vsel %vm135, %v106, 0.0
    %410 = vadd.xlane.f32.xlu0 %v409
    %v411 = vpop.xlane.xlu0 %410
    %v412 = vsel %vm135, %v107, 0.0
    %413 = vadd.xlane.f32.xlu0 %v412
    %v414 = vpop.xlane.xlu0 %413
    %v415 = vsel %vm135, %v108, 0.0
    %416 = vadd.xlane.f32.xlu0 %v415
    %v417 = vpop.xlane.xlu0 %416
    %v418 = vsel %vm135, %v109, 0.0
    %419 = vadd.xlane.f32.xlu0 %v418
    %v420 = vpop.xlane.xlu0 %419
    %v421 = vsel %vm135, %v110, 0.0
    %422 = vadd.xlane.f32.xlu0 %v421
    %v423 = vpop.xlane.xlu0 %422
    %v424 = vsel %vm135, %v111, 0.0
    %425 = vadd.xlane.f32.xlu0 %v424
    %v426 = vpop.xlane.xlu0 %425
    %v427 = vsel %vm135, %v112, 0.0
    %428 = vadd.xlane.f32.xlu0 %v427
    %v429 = vpop.xlane.xlu0 %428
    %v430 = vsel %vm135, %v113, 0.0
    %431 = vadd.xlane.f32.xlu0 %v430
    %v432 = vpop.xlane.xlu0 %431
    %v433 = vsel %vm135, %v114, 0.0
    %434 = vadd.xlane.f32.xlu0 %v433
    %v435 = vpop.xlane.xlu0 %434
    %v436 = vsel %vm135, %v115, 0.0
    %437 = vadd.xlane.f32.xlu0 %v436
    %v438 = vpop.xlane.xlu0 %437
    %v439 = vsel %vm135, %v116, 0.0
    %440 = vadd.xlane.f32.xlu0 %v439
    %v441 = vpop.xlane.xlu0 %440
    %v442 = vsel %vm135, %v117, 0.0
    %443 = vadd.xlane.f32.xlu0 %v442
    %v444 = vpop.xlane.xlu0 %443
    %v445 = vsel %vm135, %v118, 0.0
    %446 = vadd.xlane.f32.xlu0 %v445
    %v447 = vpop.xlane.xlu0 %446
    %v448 = vsel %vm135, %v119, 0.0
    %449 = vadd.xlane.f32.xlu0 %v448
    %v450 = vpop.xlane.xlu0 %449
    %v451 = vsel %vm135, %v120, 0.0
    %452 = vadd.xlane.f32.xlu0 %v451
    %v453 = vpop.xlane.xlu0 %452
    %v454 = vsel %vm135, %v121, 0.0
    %455 = vadd.xlane.f32.xlu0 %v454
    %v456 = vpop.xlane.xlu0 %455
    %v457 = vsel %vm135, %v122, 0.0
    %458 = vadd.xlane.f32.xlu0 %v457
    %v459 = vpop.xlane.xlu0 %458
    %v460 = vsel %vm135, %v123, 0.0
    %461 = vadd.xlane.f32.xlu0 %v460
    %v462 = vpop.xlane.xlu0 %461
    %v463 = vsel %vm135, %v124, 0.0
    %464 = vadd.xlane.f32.xlu0 %v463
    %v465 = vpop.xlane.xlu0 %464
    %v466 = vsel %vm135, %v125, 0.0
    %467 = vadd.xlane.f32.xlu0 %v466
    %v468 = vpop.xlane.xlu0 %467
    %v469 = vsel %vm135, %v126, 0.0
    %470 = vadd.xlane.f32.xlu0 %v469
    %v471 = vpop.xlane.xlu0 %470
    %v472 = vsel %vm135, %v127, 0.0
    %473 = vadd.xlane.f32.xlu0 %v472
    %v474 = vpop.xlane.xlu0 %473
    %v475 = vsel %vm135, %v128, 0.0
    %476 = vadd.xlane.f32.xlu0 %v475
    %v477 = vpop.xlane.xlu0 %476
    %v478 = vsel %vm135, %v129, 0.0
    %479 = vadd.xlane.f32.xlu0 %v478
    %v480 = vpop.xlane.xlu0 %479
    %v481 = vsel %vm135, %v130, 0.0
    %482 = vadd.xlane.f32.xlu0 %v481
    %v483 = vpop.xlane.xlu0 %482
    %v484 = vsel %vm135, %v131, 0.0
    %485 = vadd.xlane.f32.xlu0 %v484
    %v486 = vpop.xlane.xlu0 %485
    %v487 = vsel %vm135, %v132, 0.0
    %488 = vadd.xlane.f32.xlu0 %v487
    %v489 = vpop.xlane.xlu0 %488
    %v490 = vsel %vm135, %v133, 0.0
    %491 = vadd.xlane.f32.xlu0 %v490
    %v492 = vpop.xlane.xlu0 %491
    %v493 = vsel %vm135, %v134, 0.0
    %494 = vadd.xlane.f32.xlu0 %v493
    %v495 = vpop.xlane.xlu0 %494
    %v496 = vld [vmem:[%s1] sm:$0xff]
    %v497 = vld [vmem:[%s1 + $0x8] sm:$0xff]
    %v498 = vld [vmem:[%s1 + $0x10] sm:$0xff]
    %v499 = vld [vmem:[%s1 + $0x18] sm:$0xff]
    %v500 = vld [vmem:[%s1 + $0x20] sm:$0xff]
    %v501 = vld [vmem:[%s1 + $0x28] sm:$0xff]
    %v502 = vld [vmem:[%s1 + $0x30] sm:$0xff]
    %v503 = vld [vmem:[%s1 + $0x38] sm:$0xff]
    %v504 = vld [vmem:[%s1 + $0x40] sm:$0xff]
    %v505 = vld [vmem:[%s1 + $0x48] sm:$0xff]
    %v506 = vld [vmem:[%s1 + $0x50] sm:$0xff]
    %v507 = vld [vmem:[%s1 + $0x58] sm:$0xff]
    %v508 = vld [vmem:[%s1 + $0x60] sm:$0xff]
    %v509 = vld [vmem:[%s1 + $0x68] sm:$0xff]
    %v510 = vld [vmem:[%s1 + $0x70] sm:$0xff]
    %v511 = vld [vmem:[%s1 + $0x78] sm:$0xff]
    %v512 = vld [vmem:[%s1 + $0x80] sm:$0xff]
    %v513 = vld [vmem:[%s1 + $0x88] sm:$0xff]
    %v514 = vld [vmem:[%s1 + $0x90] sm:$0xff]
    %v515 = vld [vmem:[%s1 + $0x98] sm:$0xff]
    %v516 = vld [vmem:[%s1 + $0xa0] sm:$0xff]
    %v517 = vld [vmem:[%s1 + $0xa8] sm:$0xff]
    %v518 = vld [vmem:[%s1 + $0xb0] sm:$0xff]
    %v519 = vld [vmem:[%s1 + $0xb8] sm:$0xff]
    %v520 = vld [vmem:[%s1 + $0xc0] sm:$0xff]
    %v521 = vld [vmem:[%s1 + $0xc8] sm:$0xff]
    %v522 = vld [vmem:[%s1 + $0xd0] sm:$0xff]
    %v523 = vld [vmem:[%s1 + $0xd8] sm:$0xff]
    %v524 = vld [vmem:[%s1 + $0xe0] sm:$0xff]
    %v525 = vld [vmem:[%s1 + $0xe8] sm:$0xff]
    %v526 = vld [vmem:[%s1 + $0xf0] sm:$0xff]
    %v527 = vld [vmem:[%s1 + $0xf8] sm:$0xff]
    %v528 = vld [vmem:[%s1 + $0x100] sm:$0xff]
    %v529 = vld [vmem:[%s1 + $0x108] sm:$0xff]
    %v530 = vld [vmem:[%s1 + $0x110] sm:$0xff]
    %v531 = vld [vmem:[%s1 + $0x118] sm:$0xff]
    %v532 = vld [vmem:[%s1 + $0x120] sm:$0xff]
    %v533 = vld [vmem:[%s1 + $0x128] sm:$0xff]
    %v534 = vld [vmem:[%s1 + $0x130] sm:$0xff]
    %v535 = vld [vmem:[%s1 + $0x138] sm:$0xff]
    %v536 = vld [vmem:[%s1 + $0x140] sm:$0xff]
    %v537 = vld [vmem:[%s1 + $0x148] sm:$0xff]
    %v538 = vld [vmem:[%s1 + $0x150] sm:$0xff]
    %v539 = vld [vmem:[%s1 + $0x158] sm:$0xff]
    %v540 = vld [vmem:[%s1 + $0x160] sm:$0xff]
    %v541 = vld [vmem:[%s1 + $0x168] sm:$0xff]
    %v542 = vld [vmem:[%s1 + $0x170] sm:$0xff]
    %v543 = vld [vmem:[%s1 + $0x178] sm:$0xff]
    %v544 = vld [vmem:[%s1 + $0x180] sm:$0xff]
    %v545 = vld [vmem:[%s1 + $0x188] sm:$0xff]
    %v546 = vld [vmem:[%s1 + $0x190] sm:$0xff]
    %v547 = vld [vmem:[%s1 + $0x198] sm:$0xff]
    %v548 = vld [vmem:[%s1 + $0x1a0] sm:$0xff]
    %v549 = vld [vmem:[%s1 + $0x1a8] sm:$0xff]
    %v550 = vld [vmem:[%s1 + $0x1b0] sm:$0xff]
    %v551 = vld [vmem:[%s1 + $0x1b8] sm:$0xff]
    %v552 = vld [vmem:[%s1 + $0x1c0] sm:$0xff]
    %v553 = vld [vmem:[%s1 + $0x1c8] sm:$0xff]
    %v554 = vld [vmem:[%s1 + $0x1d0] sm:$0xff]
    %v555 = vld [vmem:[%s1 + $0x1d8] sm:$0xff]
    %v556 = vld [vmem:[%s2] sm:$0x1]
    %v558 = vlaneseq
    %v559 = vshrl.u32 %v558, 7
    %v560 = vsub.s32 0, %v559
    %v561 = vrot.slane %v556, %v560
    %v683 = vlaneseq
    %v684 = vand.u32 %v683, 127
    %v685 = vlaneseq
    %v686 = vshrl.u32 %v685, 7
    %v687 = vsub.s32 %v684, %v686
    %v688 = vrot.slane %v138, %v687
    %v689 = vadd.s32 %v684, 4294967288
    %v690 = vlaneseq
    %v691 = vshrl.u32 %v690, 7
    %v692 = vsub.s32 %v689, %v691
    %v693 = vrot.slane %v141, %v692
    %vm694 = vcmask 130112
    %v695 = vsel %vm694, %v693, %v688
    %v696 = vadd.s32 %v684, 4294967280
    %v697 = vlaneseq
    %v698 = vshrl.u32 %v697, 7
    %v699 = vsub.s32 %v696, %v698
    %v700 = vrot.slane %v144, %v699
    %vm701 = vcmask 195712
    %v702 = vsel %vm701, %v700, %v695
    %v703 = vadd.s32 %v684, 4294967272
    %v704 = vlaneseq
    %v705 = vshrl.u32 %v704, 7
    %v706 = vsub.s32 %v703, %v705
    %v707 = vrot.slane %v147, %v706
    %vm708 = vcmask 261312
    %v709 = vsel %vm708, %v707, %v702
    %v710 = vadd.s32 %v684, 4294967264
    %v711 = vlaneseq
    %v712 = vshrl.u32 %v711, 7
    %v713 = vsub.s32 %v710, %v712
    %v714 = vrot.slane %v150, %v713
    %vm715 = vcmask 326912
    %v716 = vsel %vm715, %v714, %v709
    %v717 = vadd.s32 %v684, 4294967256
    %v718 = vlaneseq
    %v719 = vshrl.u32 %v718, 7
    %v720 = vsub.s32 %v717, %v719
    %v721 = vrot.slane %v153, %v720
    %vm722 = vcmask 392512
    %v723 = vsel %vm722, %v721, %v716
    %v724 = vadd.s32 %v684, 4294967248
    %v725 = vlaneseq
    %v726 = vshrl.u32 %v725, 7
    %v727 = vsub.s32 %v724, %v726
    %v728 = vrot.slane %v156, %v727
    %vm729 = vcmask 458112
    %v730 = vsel %vm729, %v728, %v723
    %v731 = vadd.s32 %v684, 4294967240
    %v732 = vlaneseq
    %v733 = vshrl.u32 %v732, 7
    %v734 = vsub.s32 %v731, %v733
    %v735 = vrot.slane %v159, %v734
    %vm736 = vcmask 523712
    %v737 = vsel %vm736, %v735, %v730
    %v738 = vadd.s32 %v684, 4294967232
    %v739 = vlaneseq
    %v740 = vshrl.u32 %v739, 7
    %v741 = vsub.s32 %v738, %v740
    %v742 = vrot.slane %v162, %v741
    %vm743 = vcmask 589312
    %v744 = vsel %vm743, %v742, %v737
    %v745 = vadd.s32 %v684, 4294967224
    %v746 = vlaneseq
    %v747 = vshrl.u32 %v746, 7
    %v748 = vsub.s32 %v745, %v747
    %v749 = vrot.slane %v165, %v748
    %vm750 = vcmask 654912
    %v751 = vsel %vm750, %v749, %v744
    %v752 = vadd.s32 %v684, 4294967216
    %v753 = vlaneseq
    %v754 = vshrl.u32 %v753, 7
    %v755 = vsub.s32 %v752, %v754
    %v756 = vrot.slane %v168, %v755
    %vm757 = vcmask 720512
    %v758 = vsel %vm757, %v756, %v751
    %v759 = vadd.s32 %v684, 4294967208
    %v760 = vlaneseq
    %v761 = vshrl.u32 %v760, 7
    %v762 = vsub.s32 %v759, %v761
    %v763 = vrot.slane %v171, %v762
    %vm764 = vcmask 786112
    %v765 = vsel %vm764, %v763, %v758
    %v766 = vadd.s32 %v684, 4294967200
    %v767 = vlaneseq
    %v768 = vshrl.u32 %v767, 7
    %v769 = vsub.s32 %v766, %v768
    %v770 = vrot.slane %v174, %v769
    %vm771 = vcmask 851712
    %v772 = vsel %vm771, %v770, %v765
    %v773 = vadd.s32 %v684, 4294967192
    %v774 = vlaneseq
    %v775 = vshrl.u32 %v774, 7
    %v776 = vsub.s32 %v773, %v775
    %v777 = vrot.slane %v177, %v776
    %vm778 = vcmask 917312
    %v779 = vsel %vm778, %v777, %v772
    %v780 = vadd.s32 %v684, 4294967184
    %v781 = vlaneseq
    %v782 = vshrl.u32 %v781, 7
    %v783 = vsub.s32 %v780, %v782
    %v784 = vrot.slane %v180, %v783
    %vm785 = vcmask 982912
    %v786 = vsel %vm785, %v784, %v779
    %v787 = vadd.s32 %v684, 4294967176
    %v788 = vlaneseq
    %v789 = vshrl.u32 %v788, 7
    %v790 = vsub.s32 %v787, %v789
    %v791 = vrot.slane %v183, %v790
    %vm792 = vcmask 1048512
    %v793 = vsel %vm792, %v791, %v786
    %v794 = vlaneseq
    %v795 = vshrl.u32 %v794, 7
    %v796 = vsub.s32 %v684, %v795
    %v797 = vrot.slane %v186, %v796
    %v798 = vlaneseq
    %v799 = vshrl.u32 %v798, 7
    %v800 = vsub.s32 %v689, %v799
    %v801 = vrot.slane %v189, %v800
    %v802 = vsel %vm694, %v801, %v797
    %v803 = vlaneseq
    %v804 = vshrl.u32 %v803, 7
    %v805 = vsub.s32 %v696, %v804
    %v806 = vrot.slane %v192, %v805
    %v807 = vsel %vm701, %v806, %v802
    %v808 = vlaneseq
    %v809 = vshrl.u32 %v808, 7
    %v810 = vsub.s32 %v703, %v809
    %v811 = vrot.slane %v195, %v810
    %v812 = vsel %vm708, %v811, %v807
    %v813 = vlaneseq
    %v814 = vshrl.u32 %v813, 7
    %v815 = vsub.s32 %v710, %v814
    %v816 = vrot.slane %v198, %v815
    %v817 = vsel %vm715, %v816, %v812
    %v818 = vlaneseq
    %v819 = vshrl.u32 %v818, 7
    %v820 = vsub.s32 %v717, %v819
    %v821 = vrot.slane %v201, %v820
    %v822 = vsel %vm722, %v821, %v817
    %v823 = vlaneseq
    %v824 = vshrl.u32 %v823, 7
    %v825 = vsub.s32 %v724, %v824
    %v826 = vrot.slane %v204, %v825
    %v827 = vsel %vm729, %v826, %v822
    %v828 = vlaneseq
    %v829 = vshrl.u32 %v828, 7
    %v830 = vsub.s32 %v731, %v829
    %v831 = vrot.slane %v207, %v830
    %v832 = vsel %vm736, %v831, %v827
    %v833 = vlaneseq
    %v834 = vshrl.u32 %v833, 7
    %v835 = vsub.s32 %v738, %v834
    %v836 = vrot.slane %v210, %v835
    %v837 = vsel %vm743, %v836, %v832
    %v838 = vlaneseq
    %v839 = vshrl.u32 %v838, 7
    %v840 = vsub.s32 %v745, %v839
    %v841 = vrot.slane %v213, %v840
    %v842 = vsel %vm750, %v841, %v837
    %v843 = vlaneseq
    %v844 = vshrl.u32 %v843, 7
    %v845 = vsub.s32 %v752, %v844
    %v846 = vrot.slane %v216, %v845
    %v847 = vsel %vm757, %v846, %v842
    %v848 = vlaneseq
    %v849 = vshrl.u32 %v848, 7
    %v850 = vsub.s32 %v759, %v849
    %v851 = vrot.slane %v219, %v850
    %v852 = vsel %vm764, %v851, %v847
    %v853 = vlaneseq
    %v854 = vshrl.u32 %v853, 7
    %v855 = vsub.s32 %v766, %v854
    %v856 = vrot.slane %v222, %v855
    %v857 = vsel %vm771, %v856, %v852
    %v858 = vlaneseq
    %v859 = vshrl.u32 %v858, 7
    %v860 = vsub.s32 %v773, %v859
    %v861 = vrot.slane %v225, %v860
    %v862 = vsel %vm778, %v861, %v857
    %v863 = vlaneseq
    %v864 = vshrl.u32 %v863, 7
    %v865 = vsub.s32 %v780, %v864
    %v866 = vrot.slane %v228, %v865
    %v867 = vsel %vm785, %v866, %v862
    %v868 = vlaneseq
    %v869 = vshrl.u32 %v868, 7
    %v870 = vsub.s32 %v787, %v869
    %v871 = vrot.slane %v231, %v870
    %v872 = vsel %vm792, %v871, %v867
    %v873 = vlaneseq
    %v874 = vshrl.u32 %v873, 7
    %v875 = vsub.s32 %v684, %v874
    %v876 = vrot.slane %v234, %v875
    %v877 = vlaneseq
    %v878 = vshrl.u32 %v877, 7
    %v879 = vsub.s32 %v689, %v878
    %v880 = vrot.slane %v237, %v879
    %v881 = vsel %vm694, %v880, %v876
    %v882 = vlaneseq
    %v883 = vshrl.u32 %v882, 7
    %v884 = vsub.s32 %v696, %v883
    %v885 = vrot.slane %v240, %v884
    %v886 = vsel %vm701, %v885, %v881
    %v887 = vlaneseq
    %v888 = vshrl.u32 %v887, 7
    %v889 = vsub.s32 %v703, %v888
    %v890 = vrot.slane %v243, %v889
    %v891 = vsel %vm708, %v890, %v886
    %v892 = vlaneseq
    %v893 = vshrl.u32 %v892, 7
    %v894 = vsub.s32 %v710, %v893
    %v895 = vrot.slane %v246, %v894
    %v896 = vsel %vm715, %v895, %v891
    %v897 = vlaneseq
    %v898 = vshrl.u32 %v897, 7
    %v899 = vsub.s32 %v717, %v898
    %v900 = vrot.slane %v249, %v899
    %v901 = vsel %vm722, %v900, %v896
    %v902 = vlaneseq
    %v903 = vshrl.u32 %v902, 7
    %v904 = vsub.s32 %v724, %v903
    %v905 = vrot.slane %v252, %v904
    %v906 = vsel %vm729, %v905, %v901
    %v907 = vlaneseq
    %v908 = vshrl.u32 %v907, 7
    %v909 = vsub.s32 %v731, %v908
    %v910 = vrot.slane %v255, %v909
    %v911 = vsel %vm736, %v910, %v906
    %v912 = vlaneseq
    %v913 = vshrl.u32 %v912, 7
    %v914 = vsub.s32 %v738, %v913
    %v915 = vrot.slane %v258, %v914
    %v916 = vsel %vm743, %v915, %v911
    %v917 = vlaneseq
    %v918 = vshrl.u32 %v917, 7
    %v919 = vsub.s32 %v745, %v918
    %v920 = vrot.slane %v261, %v919
    %v921 = vsel %vm750, %v920, %v916
    %v922 = vlaneseq
    %v923 = vshrl.u32 %v922, 7
    %v924 = vsub.s32 %v752, %v923
    %v925 = vrot.slane %v264, %v924
    %v926 = vsel %vm757, %v925, %v921
    %v927 = vlaneseq
    %v928 = vshrl.u32 %v927, 7
    %v929 = vsub.s32 %v759, %v928
    %v930 = vrot.slane %v267, %v929
    %v931 = vsel %vm764, %v930, %v926
    %v932 = vlaneseq
    %v933 = vshrl.u32 %v932, 7
    %v934 = vsub.s32 %v766, %v933
    %v935 = vrot.slane %v270, %v934
    %v936 = vsel %vm771, %v935, %v931
    %v937 = vlaneseq
    %v938 = vshrl.u32 %v937, 7
    %v939 = vsub.s32 %v773, %v938
    %v940 = vrot.slane %v273, %v939
    %v941 = vsel %vm778, %v940, %v936
    %v942 = vlaneseq
    %v943 = vshrl.u32 %v942, 7
    %v944 = vsub.s32 %v780, %v943
    %v945 = vrot.slane %v276, %v944
    %v946 = vsel %vm785, %v945, %v941
    %v947 = vlaneseq
    %v948 = vshrl.u32 %v947, 7
    %v949 = vsub.s32 %v787, %v948
    %v950 = vrot.slane %v279, %v949
    %v951 = vsel %vm792, %v950, %v946
    %v952 = vlaneseq
    %v953 = vshrl.u32 %v952, 7
    %v954 = vsub.s32 %v684, %v953
    %v955 = vrot.slane %v282, %v954
    %v956 = vlaneseq
    %v957 = vshrl.u32 %v956, 7
    %v958 = vsub.s32 %v689, %v957
    %v959 = vrot.slane %v285, %v958
    %v960 = vsel %vm694, %v959, %v955
    %v961 = vlaneseq
    %v962 = vshrl.u32 %v961, 7
    %v963 = vsub.s32 %v696, %v962
    %v964 = vrot.slane %v288, %v963
    %v965 = vsel %vm701, %v964, %v960
    %v966 = vlaneseq
    %v967 = vshrl.u32 %v966, 7
    %v968 = vsub.s32 %v703, %v967
    %v969 = vrot.slane %v291, %v968
    %v970 = vsel %vm708, %v969, %v965
    %v971 = vlaneseq
    %v972 = vshrl.u32 %v971, 7
    %v973 = vsub.s32 %v710, %v972
    %v974 = vrot.slane %v294, %v973
    %v975 = vsel %vm715, %v974, %v970
    %v976 = vlaneseq
    %v977 = vshrl.u32 %v976, 7
    %v978 = vsub.s32 %v717, %v977
    %v979 = vrot.slane %v297, %v978
    %v980 = vsel %vm722, %v979, %v975
    %v981 = vlaneseq
    %v982 = vshrl.u32 %v981, 7
    %v983 = vsub.s32 %v724, %v982
    %v984 = vrot.slane %v300, %v983
    %v985 = vsel %vm729, %v984, %v980
    %v986 = vlaneseq
    %v987 = vshrl.u32 %v986, 7
    %v988 = vsub.s32 %v731, %v987
    %v989 = vrot.slane %v303, %v988
    %v990 = vsel %vm736, %v989, %v985
    %v991 = vlaneseq
    %v992 = vshrl.u32 %v991, 7
    %v993 = vsub.s32 %v738, %v992
    %v994 = vrot.slane %v306, %v993
    %v995 = vsel %vm743, %v994, %v990
    %v996 = vlaneseq
    %v997 = vshrl.u32 %v996, 7
    %v998 = vsub.s32 %v745, %v997
    %v999 = vrot.slane %v309, %v998
    %v1000 = vsel %vm750, %v999, %v995
    %v1001 = vlaneseq
    %v1002 = vshrl.u32 %v1001, 7
    %v1003 = vsub.s32 %v752, %v1002
    %v1004 = vrot.slane %v312, %v1003
    %v1005 = vsel %vm757, %v1004, %v1000
    %v1006 = vlaneseq
    %v1007 = vshrl.u32 %v1006, 7
    %v1008 = vsub.s32 %v759, %v1007
    %v1009 = vrot.slane %v315, %v1008
    %v1010 = vsel %vm764, %v1009, %v1005
    %v1011 = vlaneseq
    %v1012 = vshrl.u32 %v1011, 7
    %v1013 = vsub.s32 %v684, %v1012
    %v1014 = vrot.slane %v318, %v1013
    %v1015 = vlaneseq
    %v1016 = vshrl.u32 %v1015, 7
    %v1017 = vsub.s32 %v689, %v1016
    %v1018 = vrot.slane %v321, %v1017
    %v1019 = vsel %vm694, %v1018, %v1014
    %v1020 = vlaneseq
    %v1021 = vshrl.u32 %v1020, 7
    %v1022 = vsub.s32 %v696, %v1021
    %v1023 = vrot.slane %v324, %v1022
    %v1024 = vsel %vm701, %v1023, %v1019
    %v1025 = vlaneseq
    %v1026 = vshrl.u32 %v1025, 7
    %v1027 = vsub.s32 %v703, %v1026
    %v1028 = vrot.slane %v327, %v1027
    %v1029 = vsel %vm708, %v1028, %v1024
    %v1030 = vlaneseq
    %v1031 = vshrl.u32 %v1030, 7
    %v1032 = vsub.s32 %v710, %v1031
    %v1033 = vrot.slane %v330, %v1032
    %v1034 = vsel %vm715, %v1033, %v1029
    %v1035 = vlaneseq
    %v1036 = vshrl.u32 %v1035, 7
    %v1037 = vsub.s32 %v717, %v1036
    %v1038 = vrot.slane %v333, %v1037
    %v1039 = vsel %vm722, %v1038, %v1034
    %v1040 = vlaneseq
    %v1041 = vshrl.u32 %v1040, 7
    %v1042 = vsub.s32 %v724, %v1041
    %v1043 = vrot.slane %v336, %v1042
    %v1044 = vsel %vm729, %v1043, %v1039
    %v1045 = vlaneseq
    %v1046 = vshrl.u32 %v1045, 7
    %v1047 = vsub.s32 %v731, %v1046
    %v1048 = vrot.slane %v339, %v1047
    %v1049 = vsel %vm736, %v1048, %v1044
    %v1050 = vlaneseq
    %v1051 = vshrl.u32 %v1050, 7
    %v1052 = vsub.s32 %v738, %v1051
    %v1053 = vrot.slane %v342, %v1052
    %v1054 = vsel %vm743, %v1053, %v1049
    %v1055 = vlaneseq
    %v1056 = vshrl.u32 %v1055, 7
    %v1057 = vsub.s32 %v745, %v1056
    %v1058 = vrot.slane %v345, %v1057
    %v1059 = vsel %vm750, %v1058, %v1054
    %v1060 = vlaneseq
    %v1061 = vshrl.u32 %v1060, 7
    %v1062 = vsub.s32 %v752, %v1061
    %v1063 = vrot.slane %v348, %v1062
    %v1064 = vsel %vm757, %v1063, %v1059
    %v1065 = vlaneseq
    %v1066 = vshrl.u32 %v1065, 7
    %v1067 = vsub.s32 %v759, %v1066
    %v1068 = vrot.slane %v351, %v1067
    %v1069 = vsel %vm764, %v1068, %v1064
    %v1070 = vlaneseq
    %v1071 = vshrl.u32 %v1070, 7
    %v1072 = vsub.s32 %v766, %v1071
    %v1073 = vrot.slane %v354, %v1072
    %v1074 = vsel %vm771, %v1073, %v1069
    %v1075 = vlaneseq
    %v1076 = vshrl.u32 %v1075, 7
    %v1077 = vsub.s32 %v773, %v1076
    %v1078 = vrot.slane %v357, %v1077
    %v1079 = vsel %vm778, %v1078, %v1074
    %v1080 = vlaneseq
    %v1081 = vshrl.u32 %v1080, 7
    %v1082 = vsub.s32 %v780, %v1081
    %v1083 = vrot.slane %v360, %v1082
    %v1084 = vsel %vm785, %v1083, %v1079
    %v1085 = vlaneseq
    %v1086 = vshrl.u32 %v1085, 7
    %v1087 = vsub.s32 %v787, %v1086
    %v1088 = vrot.slane %v363, %v1087
    %v1089 = vsel %vm792, %v1088, %v1084
    %v1090 = vlaneseq
    %v1091 = vshrl.u32 %v1090, 7
    %v1092 = vsub.s32 %v684, %v1091
    %v1093 = vrot.slane %v366, %v1092
    %v1094 = vlaneseq
    %v1095 = vshrl.u32 %v1094, 7
    %v1096 = vsub.s32 %v689, %v1095
    %v1097 = vrot.slane %v369, %v1096
    %v1098 = vsel %vm694, %v1097, %v1093
    %v1099 = vlaneseq
    %v1100 = vshrl.u32 %v1099, 7
    %v1101 = vsub.s32 %v696, %v1100
    %v1102 = vrot.slane %v372, %v1101
    %v1103 = vsel %vm701, %v1102, %v1098
    %v1104 = vlaneseq
    %v1105 = vshrl.u32 %v1104, 7
    %v1106 = vsub.s32 %v703, %v1105
    %v1107 = vrot.slane %v375, %v1106
    %v1108 = vsel %vm708, %v1107, %v1103
    %v1109 = vlaneseq
    %v1110 = vshrl.u32 %v1109, 7
    %v1111 = vsub.s32 %v710, %v1110
    %v1112 = vrot.slane %v378, %v1111
    %v1113 = vsel %vm715, %v1112, %v1108
    %v1114 = vlaneseq
    %v1115 = vshrl.u32 %v1114, 7
    %v1116 = vsub.s32 %v717, %v1115
    %v1117 = vrot.slane %v381, %v1116
    %v1118 = vsel %vm722, %v1117, %v1113
    %v1119 = vlaneseq
    %v1120 = vshrl.u32 %v1119, 7
    %v1121 = vsub.s32 %v724, %v1120
    %v1122 = vrot.slane %v384, %v1121
    %v1123 = vsel %vm729, %v1122, %v1118
    %v1124 = vlaneseq
    %v1125 = vshrl.u32 %v1124, 7
    %v1126 = vsub.s32 %v731, %v1125
    %v1127 = vrot.slane %v387, %v1126
    %v1128 = vsel %vm736, %v1127, %v1123
    %v1129 = vlaneseq
    %v1130 = vshrl.u32 %v1129, 7
    %v1131 = vsub.s32 %v738, %v1130
    %v1132 = vrot.slane %v390, %v1131
    %v1133 = vsel %vm743, %v1132, %v1128
    %v1134 = vlaneseq
    %v1135 = vshrl.u32 %v1134, 7
    %v1136 = vsub.s32 %v745, %v1135
    %v1137 = vrot.slane %v393, %v1136
    %v1138 = vsel %vm750, %v1137, %v1133
    %v1139 = vlaneseq
    %v1140 = vshrl.u32 %v1139, 7
    %v1141 = vsub.s32 %v752, %v1140
    %v1142 = vrot.slane %v396, %v1141
    %v1143 = vsel %vm757, %v1142, %v1138
    %v1144 = vlaneseq
    %v1145 = vshrl.u32 %v1144, 7
    %v1146 = vsub.s32 %v759, %v1145
    %v1147 = vrot.slane %v399, %v1146
    %v1148 = vsel %vm764, %v1147, %v1143
    %v1149 = vlaneseq
    %v1150 = vshrl.u32 %v1149, 7
    %v1151 = vsub.s32 %v766, %v1150
    %v1152 = vrot.slane %v402, %v1151
    %v1153 = vsel %vm771, %v1152, %v1148
    %v1154 = vlaneseq
    %v1155 = vshrl.u32 %v1154, 7
    %v1156 = vsub.s32 %v773, %v1155
    %v1157 = vrot.slane %v405, %v1156
    %v1158 = vsel %vm778, %v1157, %v1153
    %v1159 = vlaneseq
    %v1160 = vshrl.u32 %v1159, 7
    %v1161 = vsub.s32 %v780, %v1160
    %v1162 = vrot.slane %v408, %v1161
    %v1163 = vsel %vm785, %v1162, %v1158
    %v1164 = vlaneseq
    %v1165 = vshrl.u32 %v1164, 7
    %v1166 = vsub.s32 %v787, %v1165
    %v1167 = vrot.slane %v411, %v1166
    %v1168 = vsel %vm792, %v1167, %v1163
    %v1169 = vlaneseq
    %v1170 = vshrl.u32 %v1169, 7
    %v1171 = vsub.s32 %v684, %v1170
    %v1172 = vrot.slane %v414, %v1171
    %v1173 = vlaneseq
    %v1174 = vshrl.u32 %v1173, 7
    %v1175 = vsub.s32 %v689, %v1174
    %v1176 = vrot.slane %v417, %v1175
    %v1177 = vsel %vm694, %v1176, %v1172
    %v1178 = vlaneseq
    %v1179 = vshrl.u32 %v1178, 7
    %v1180 = vsub.s32 %v696, %v1179
    %v1181 = vrot.slane %v420, %v1180
    %v1182 = vsel %vm701, %v1181, %v1177
    %v1183 = vlaneseq
    %v1184 = vshrl.u32 %v1183, 7
    %v1185 = vsub.s32 %v703, %v1184
    %v1186 = vrot.slane %v423, %v1185
    %v1187 = vsel %vm708, %v1186, %v1182
    %v1188 = vlaneseq
    %v1189 = vshrl.u32 %v1188, 7
    %v1190 = vsub.s32 %v710, %v1189
    %v1191 = vrot.slane %v426, %v1190
    %v1192 = vsel %vm715, %v1191, %v1187
    %v1193 = vlaneseq
    %v1194 = vshrl.u32 %v1193, 7
    %v1195 = vsub.s32 %v717, %v1194
    %v1196 = vrot.slane %v429, %v1195
    %v1197 = vsel %vm722, %v1196, %v1192
    %v1198 = vlaneseq
    %v1199 = vshrl.u32 %v1198, 7
    %v1200 = vsub.s32 %v724, %v1199
    %v1201 = vrot.slane %v432, %v1200
    %v1202 = vsel %vm729, %v1201, %v1197
    %v1203 = vlaneseq
    %v1204 = vshrl.u32 %v1203, 7
    %v1205 = vsub.s32 %v731, %v1204
    %v1206 = vrot.slane %v435, %v1205
    %v1207 = vsel %vm736, %v1206, %v1202
    %v1208 = vlaneseq
    %v1209 = vshrl.u32 %v1208, 7
    %v1210 = vsub.s32 %v738, %v1209
    %v1211 = vrot.slane %v438, %v1210
    %v1212 = vsel %vm743, %v1211, %v1207
    %v1213 = vlaneseq
    %v1214 = vshrl.u32 %v1213, 7
    %v1215 = vsub.s32 %v745, %v1214
    %v1216 = vrot.slane %v441, %v1215
    %v1217 = vsel %vm750, %v1216, %v1212
    %v1218 = vlaneseq
    %v1219 = vshrl.u32 %v1218, 7
    %v1220 = vsub.s32 %v752, %v1219
    %v1221 = vrot.slane %v444, %v1220
    %v1222 = vsel %vm757, %v1221, %v1217
    %v1223 = vlaneseq
    %v1224 = vshrl.u32 %v1223, 7
    %v1225 = vsub.s32 %v759, %v1224
    %v1226 = vrot.slane %v447, %v1225
    %v1227 = vsel %vm764, %v1226, %v1222
    %v1228 = vlaneseq
    %v1229 = vshrl.u32 %v1228, 7
    %v1230 = vsub.s32 %v766, %v1229
    %v1231 = vrot.slane %v450, %v1230
    %v1232 = vsel %vm771, %v1231, %v1227
    %v1233 = vlaneseq
    %v1234 = vshrl.u32 %v1233, 7
    %v1235 = vsub.s32 %v773, %v1234
    %v1236 = vrot.slane %v453, %v1235
    %v1237 = vsel %vm778, %v1236, %v1232
    %v1238 = vlaneseq
    %v1239 = vshrl.u32 %v1238, 7
    %v1240 = vsub.s32 %v780, %v1239
    %v1241 = vrot.slane %v456, %v1240
    %v1242 = vsel %vm785, %v1241, %v1237
    %v1243 = vlaneseq
    %v1244 = vshrl.u32 %v1243, 7
    %v1245 = vsub.s32 %v787, %v1244
    %v1246 = vrot.slane %v459, %v1245
    %v1247 = vsel %vm792, %v1246, %v1242
    %v1248 = vlaneseq
    %v1249 = vshrl.u32 %v1248, 7
    %v1250 = vsub.s32 %v684, %v1249
    %v1251 = vrot.slane %v462, %v1250
    %v1252 = vlaneseq
    %v1253 = vshrl.u32 %v1252, 7
    %v1254 = vsub.s32 %v689, %v1253
    %v1255 = vrot.slane %v465, %v1254
    %v1256 = vsel %vm694, %v1255, %v1251
    %v1257 = vlaneseq
    %v1258 = vshrl.u32 %v1257, 7
    %v1259 = vsub.s32 %v696, %v1258
    %v1260 = vrot.slane %v468, %v1259
    %v1261 = vsel %vm701, %v1260, %v1256
    %v1262 = vlaneseq
    %v1263 = vshrl.u32 %v1262, 7
    %v1264 = vsub.s32 %v703, %v1263
    %v1265 = vrot.slane %v471, %v1264
    %v1266 = vsel %vm708, %v1265, %v1261
    %v1267 = vlaneseq
    %v1268 = vshrl.u32 %v1267, 7
    %v1269 = vsub.s32 %v710, %v1268
    %v1270 = vrot.slane %v474, %v1269
    %v1271 = vsel %vm715, %v1270, %v1266
    %v1272 = vlaneseq
    %v1273 = vshrl.u32 %v1272, 7
    %v1274 = vsub.s32 %v717, %v1273
    %v1275 = vrot.slane %v477, %v1274
    %v1276 = vsel %vm722, %v1275, %v1271
    %v1277 = vlaneseq
    %v1278 = vshrl.u32 %v1277, 7
    %v1279 = vsub.s32 %v724, %v1278
    %v1280 = vrot.slane %v480, %v1279
    %v1281 = vsel %vm729, %v1280, %v1276
    %v1282 = vlaneseq
    %v1283 = vshrl.u32 %v1282, 7
    %v1284 = vsub.s32 %v731, %v1283
    %v1285 = vrot.slane %v483, %v1284
    %v1286 = vsel %vm736, %v1285, %v1281
    %v1287 = vlaneseq
    %v1288 = vshrl.u32 %v1287, 7
    %v1289 = vsub.s32 %v738, %v1288
    %v1290 = vrot.slane %v486, %v1289
    %v1291 = vsel %vm743, %v1290, %v1286
    %v1292 = vlaneseq
    %v1293 = vshrl.u32 %v1292, 7
    %v1294 = vsub.s32 %v745, %v1293
    %v1295 = vrot.slane %v489, %v1294
    %v1296 = vsel %vm750, %v1295, %v1291
    %v1297 = vlaneseq
    %v1298 = vshrl.u32 %v1297, 7
    %v1299 = vsub.s32 %v752, %v1298
    %v1300 = vrot.slane %v492, %v1299
    %v1301 = vsel %vm757, %v1300, %v1296
    %v1302 = vlaneseq
    %v1303 = vshrl.u32 %v1302, 7
    %v1304 = vsub.s32 %v759, %v1303
    %v1305 = vrot.slane %v495, %v1304
    %v1306 = vsel %vm764, %v1305, %v1301
    %vm1307 = vcmask 1041409
    %v1308 = vsel %vm1307, %v1089, %v793
    %v1309 = vsel %vm1307, %v1168, %v872
    %v1310 = vsel %vm1307, %v1247, %v951
    %v1311 = vsel %vm1307, %v1306, %v1010
    %vm1315 = vcmask 785408
    %v1316 = vsel %vm1315, %v1311, 0
    %1318 = vmatprep.subr.mxu0 0.0
    %1319 = vmatpush1.msra.mxu0 %v511
    %1320 = vmatprep.subr.mxu0 0.0
    %1321 = vmatpush1.msra.mxu0 %v510
    %1322 = vmatprep.subr.mxu0 0.0
    %1323 = vmatpush1.msra.mxu0 %v509
    %1324 = vmatprep.subr.mxu0 0.0
    %1325 = vmatpush1.msra.mxu0 %v508
    %1326 = vmatprep.subr.mxu0 0.0
    %1327 = vmatpush1.msra.mxu0 %v507
    %1328 = vmatprep.subr.mxu0 0.0
    %1329 = vmatpush1.msra.mxu0 %v506
    %1330 = vmatprep.subr.mxu0 0.0
    %1331 = vmatpush1.msra.mxu0 %v505
    %1332 = vmatprep.subr.mxu0 0.0
    %1333 = vmatpush1.msra.mxu0 %v504
    %1334 = vmatprep.subr.mxu0 0.0
    %1335 = vmatpush1.msra.mxu0 %v503
    %1336 = vmatprep.subr.mxu0 0.0
    %1337 = vmatpush1.msra.mxu0 %v502
    %1338 = vmatprep.subr.mxu0 0.0
    %1339 = vmatpush1.msra.mxu0 %v501
    %1340 = vmatprep.subr.mxu0 0.0
    %1341 = vmatpush1.msra.mxu0 %v500
    %1342 = vmatprep.subr.mxu0 0.0
    %1343 = vmatpush1.msra.mxu0 %v499
    %1344 = vmatprep.subr.mxu0 0.0
    %1345 = vmatpush1.msra.mxu0 %v498
    %1346 = vmatprep.subr.mxu0 0.0
    %1347 = vmatpush1.msra.mxu0 %v497
    %1348 = vmatprep.subr.mxu0 0.0
    %1349 = vmatpush1.msra.mxu0 %v496
    %1350 = vmatprep.subr.mxu0 0.0
    %1351 = vmatpush2.msra.mxu0 %v527
    %1352 = vmatprep.subr.mxu0 0.0
    %1353 = vmatpush2.msra.mxu0 %v526
    %1354 = vmatprep.subr.mxu0 0.0
    %1355 = vmatpush2.msra.mxu0 %v525
    %1356 = vmatprep.subr.mxu0 0.0
    %1357 = vmatpush2.msra.mxu0 %v524
    %1358 = vmatprep.subr.mxu0 0.0
    %1359 = vmatpush2.msra.mxu0 %v523
    %1360 = vmatprep.subr.mxu0 0.0
    %1361 = vmatpush2.msra.mxu0 %v522
    %1362 = vmatprep.subr.mxu0 0.0
    %1363 = vmatpush2.msra.mxu0 %v521
    %1364 = vmatprep.subr.mxu0 0.0
    %1365 = vmatpush2.msra.mxu0 %v520
    %1366 = vmatprep.subr.mxu0 0.0
    %1367 = vmatpush2.msra.mxu0 %v519
    %1368 = vmatprep.subr.mxu0 0.0
    %1369 = vmatpush2.msra.mxu0 %v518
    %1370 = vmatprep.subr.mxu0 0.0
    %1371 = vmatpush2.msra.mxu0 %v517
    %1372 = vmatprep.subr.mxu0 0.0
    %1373 = vmatpush2.msra.mxu0 %v516
    %1374 = vmatprep.subr.mxu0 0.0
    %1375 = vmatpush2.msra.mxu0 %v515
    %1376 = vmatprep.subr.mxu0 0.0
    %1377 = vmatpush2.msra.mxu0 %v514
    %1378 = vmatprep.subr.mxu0 0.0
    %1379 = vmatpush2.msra.mxu0 %v513
    %1380 = vmatprep.subr.mxu0 0.0
    %1381 = vmatpush2.msra.mxu0 %v512
    %1382 = vmatprep.mubr.f32.mxu0 %v1309
    %1383 = vmatmul.mubr.f32.gmra.mxu0 %v1308
    %v1384 = vpop.f32.mrf.mxu0
    %v1385 = vadd.f32 %v561, %v1384
    %v1386 = vpop.f32.mrf.mxu0
    %1387 = vdwg.mxu0
    %1388 = vmatprep.subr.mxu0 0.0
    %1389 = vmatpush1.msra.mxu0 %v543
    %1390 = vmatprep.subr.mxu0 0.0
    %1391 = vmatpush1.msra.mxu0 %v542
    %1392 = vmatprep.subr.mxu0 0.0
    %1393 = vmatpush1.msra.mxu0 %v541
    %1394 = vmatprep.subr.mxu0 0.0
    %1395 = vmatpush1.msra.mxu0 %v540
    %1396 = vmatprep.subr.mxu0 0.0
    %1397 = vmatpush1.msra.mxu0 %v539
    %1398 = vmatprep.subr.mxu0 0.0
    %1399 = vmatpush1.msra.mxu0 %v538
    %1400 = vmatprep.subr.mxu0 0.0
    %1401 = vmatpush1.msra.mxu0 %v537
    %1402 = vmatprep.subr.mxu0 0.0
    %1403 = vmatpush1.msra.mxu0 %v536
    %1404 = vmatprep.subr.mxu0 0.0
    %1405 = vmatpush1.msra.mxu0 %v535
    %1406 = vmatprep.subr.mxu0 0.0
    %1407 = vmatpush1.msra.mxu0 %v534
    %1408 = vmatprep.subr.mxu0 0.0
    %1409 = vmatpush1.msra.mxu0 %v533
    %1410 = vmatprep.subr.mxu0 0.0
    %1411 = vmatpush1.msra.mxu0 %v532
    %1412 = vmatprep.subr.mxu0 0.0
    %1413 = vmatpush1.msra.mxu0 %v531
    %1414 = vmatprep.subr.mxu0 0.0
    %1415 = vmatpush1.msra.mxu0 %v530
    %1416 = vmatprep.subr.mxu0 0.0
    %1417 = vmatpush1.msra.mxu0 %v529
    %1418 = vmatprep.subr.mxu0 0.0
    %1419 = vmatpush1.msra.mxu0 %v528
    %1420 = vmatprep.subr.mxu0 0.0
    %1421 = vmatpush2.msra.mxu0 0.0
    %1422 = vmatprep.subr.mxu0 0.0
    %1423 = vmatpush2.msra.mxu0 0.0
    %1424 = vmatprep.subr.mxu0 0.0
    %1425 = vmatpush2.msra.mxu0 0.0
    %1426 = vmatprep.subr.mxu0 0.0
    %1427 = vmatpush2.msra.mxu0 0.0
    %1428 = vmatprep.subr.mxu0 0.0
    %1429 = vmatpush2.msra.mxu0 %v555
    %1430 = vmatprep.subr.mxu0 0.0
    %1431 = vmatpush2.msra.mxu0 %v554
    %1432 = vmatprep.subr.mxu0 0.0
    %1433 = vmatpush2.msra.mxu0 %v553
    %1434 = vmatprep.subr.mxu0 0.0
    %1435 = vmatpush2.msra.mxu0 %v552
    %1436 = vmatprep.subr.mxu0 0.0
    %1437 = vmatpush2.msra.mxu0 %v551
    %1438 = vmatprep.subr.mxu0 0.0
    %1439 = vmatpush2.msra.mxu0 %v550
    %1440 = vmatprep.subr.mxu0 0.0
    %1441 = vmatpush2.msra.mxu0 %v549
    %1442 = vmatprep.subr.mxu0 0.0
    %1443 = vmatpush2.msra.mxu0 %v548
    %1444 = vmatprep.subr.mxu0 0.0
    %1445 = vmatpush2.msra.mxu0 %v547
    %1446 = vmatprep.subr.mxu0 0.0
    %1447 = vmatpush2.msra.mxu0 %v546
    %1448 = vmatprep.subr.mxu0 0.0
    %1449 = vmatpush2.msra.mxu0 %v545
    %1450 = vmatprep.subr.mxu0 0.0
    %1451 = vmatpush2.msra.mxu0 %v544
    %1452 = vmatprep.mubr.f32.mxu0 %v1316
    %1453 = vmatmul.mubr.f32.gmra.mxu0 %v1310
    %v1454 = vpop.f32.mrf.mxu0
    %v1455 = vadd.f32 %v1385, %v1454
    %v1456 = vpop.f32.mrf.mxu0
    %1457 = vdwg.mxu0
    %1458 = vst [vmem:[#allocation2] sm:$0x3] %v1455
    // Predicated region
    $region14: #{tpu_custom_call.1} parent=1 // pred_check
      _
    $region15: #{tpu_custom_call.1} parent=1 // pred_check_branch
      %1460 = sbr.rel (0) target = $region17
    $region16: #{tpu_custom_call.1} parent=1 // pred_region
      %s1462 = ssub.s32 32, 32
      %1463 = vsyncadd [#allocation3], %s1462
      %s1465 = sshll.u32 [#allocation2], 4
      %s1466 = int_to_ptr.vmem [resolvable:$true] %s1465
      %1468 = dma.vmem_to_hbm [thread:$0]  %s1466, 32, %s3, [#allocation3]
    $region17: #{tpu_custom_call.1} parent=1 // pred_fallthru
      _
    // Predicated region
    $region18: #{tpu_custom_call.1} parent=1 // pred_check
      _
    $region19: #{tpu_custom_call.1} parent=1 // pred_check_branch
      %1470 = sbr.rel (0) target = $region21
    $region20: #{tpu_custom_call.1} parent=1 // pred_region
      %1471 = dma.done [#allocation3], 32
    $region21: #{tpu_custom_call.1} parent=1 // pred_fallthru
      _
    %1472 = vsyncpa [#allocation3], 1

</llo_original>
